<compile_context>
chip_gen: v5e
topology: v5e:2x2
jax: 0.10.0
libtpu: 0.0.40
codegen_flags: <defaults>
</compile_context>

<pallas_src>
import functools

import jax
import jax.numpy as jnp
import numpy as np
from jax.experimental import pallas as pl
from jax.experimental.pallas import tpu as pltpu


LANE = 128


def _round_up(x, m):
    return ((x + m - 1) // m) * m


def _pick_batch_block(B, T, target_rows=512):
    """Largest divisor of B such that Bblk*T stays near the target MXU M."""
    best = 1
    for cand in range(1, B + 1):
        if B % cand == 0 and cand * T <= max(target_rows, T):
            best = cand
    return best


# -----------------------------------------------------------------------------
# Kernel 1: fused MultibranchTemporalBlock.
#   stage0 (all branches, causal dilated conv + folded BN + ReLU)
#   stage1 (all branches, causal dilated conv + folded BN + ReLU)
#   residual (optional fused 1x1 downsample conv) + final ReLU
# Causal padding lives in VMEM scratch; matmul M = Bblk*T; channels are 128-padded.
# -----------------------------------------------------------------------------
def _tcn_block_kernel(*refs, kmax, dilation, seq_len, padr, has_ds, bblk):
    if has_ds:
        (x_ref, w0_ref, b0_ref, w1_ref, b1_ref, wd_ref, bd_ref,
         o_ref, xpad_ref, hpad_ref) = refs
    else:
        (x_ref, w0_ref, b0_ref, w1_ref, b1_ref,
         o_ref, xpad_ref, hpad_ref) = refs
        wd_ref = bd_ref = None

    T = seq_len
    pad = (kmax - 1) * dilation
    off = padr - pad                       # padr is pad rounded up to 8 (aligned stores)
    cin = x_ref.shape[-1]
    cout = o_ref.shape[-1]
    M = bblk * T

    x = x_ref[...]                                            # (Bblk, T, Cin)
    x2d = x.reshape(M, cin)

    # ---- zero the causal pad rows of both scratch buffers, once per pallas_call ----
    if padr > 0:
        @pl.when(pl.program_id(0) == 0)
        def _():
            xpad_ref[:, :padr, :] = jnp.zeros((bblk, padr, cin), xpad_ref.dtype)
            hpad_ref[:, :padr, :] = jnp.zeros((bblk, padr, cout), hpad_ref.dtype)

    # ---- causal left-pad of the input, in VMEM (no HBM jnp.pad round-trip) ----
    xpad_ref[:, padr:, :] = x

    # ---- stage 0: all branches fused into one (M, Cin) x (Cin, Cout) conv ----
    acc0 = jnp.broadcast_to(b0_ref[...], (M, cout)).astype(jnp.float32)
    for j in range(kmax):                                     # static unrolled taps
        xs = xpad_ref[:, pl.ds(off + j * dilation, T), :]     # (Bblk, T, Cin)
        acc0 = acc0 + jnp.dot(xs.reshape(M, cin), w0_ref[j],
                              preferred_element_type=jnp.float32)
    h = jnp.maximum(acc0, 0.0)                                # per-branch ReLU (stage 0)

    # ---- stage 1 (input is the concatenated stage-0 output, padded causally) ----
    hpad_ref[:, padr:, :] = h.reshape(bblk, T, cout).astype(hpad_ref.dtype)

    acc1 = jnp.broadcast_to(b1_ref[...], (M, cout)).astype(jnp.float32)
    for j in range(kmax):
        hs = hpad_ref[:, pl.ds(off + j * dilation, T), :]     # (Bblk, T, Cout)
        acc1 = acc1 + jnp.dot(hs.reshape(M, cout), w1_ref[j],
                              preferred_element_type=jnp.float32)
    out1 = jnp.maximum(acc1, 0.0)                             # per-branch ReLU (stage 1)

    # ---- residual path (fused 1x1 downsample) + final ReLU ----
    if has_ds:
        res = jnp.dot(x2d, wd_ref[0],
                      preferred_element_type=jnp.float32) + bd_ref[...]
    else:
        res = x2d.astype(jnp.float32)                         # identity residual
    y = jnp.maximum(out1 + res, 0.0)
    o_ref[...] = y.reshape(bblk, T, cout).astype(o_ref.dtype)


def tcn_block(x, lp, *, bblk):
    """x: (B, T, Cin_p); lp: fused layer params -> (B, T, Cout_p)."""
    B, T, cin_p = x.shape
    kmax = lp['kmax']
    d = lp['dilation']
    cout_p = lp['w0'].shape[-1]
    pad = (kmax - 1) * d
    padr = _round_up(pad, 8) if pad > 0 else 0
    has_ds = lp['wd'] is not None

    args = [x, lp['w0'], lp['b0'], lp['w1'], lp['b1']]
    in_specs = [
        pl.BlockSpec((bblk, T, cin_p), lambda i: (i, 0, 0)),
        pl.BlockSpec((kmax, cin_p, cout_p), lambda i: (0, 0, 0)),
        pl.BlockSpec((1, cout_p), lambda i: (0, 0)),
        pl.BlockSpec((kmax, cout_p, cout_p), lambda i: (0, 0, 0)),
        pl.BlockSpec((1, cout_p), lambda i: (0, 0)),
    ]
    if has_ds:
        args += [lp['wd'], lp['bd']]
        in_specs += [pl.BlockSpec((1, cin_p, cout_p), lambda i: (0, 0, 0)),
                     pl.BlockSpec((1, cout_p), lambda i: (0, 0))]

    kernel = functools.partial(_tcn_block_kernel, kmax=kmax, dilation=d,
                               seq_len=T, padr=padr, has_ds=has_ds, bblk=bblk)
    return pl.pallas_call(
        kernel,
        out_shape=jax.ShapeDtypeStruct((B, T, cout_p), x.dtype),
        grid_spec=pltpu.PrefetchScalarGridSpec(
            num_scalar_prefetch=0,
            grid=(B // bblk,),
            in_specs=in_specs,
            out_specs=pl.BlockSpec((bblk, T, cout_p), lambda i: (i, 0, 0)),
            scratch_shapes=[pltpu.VMEM((bblk, padr + T, cin_p), x.dtype),
                            pltpu.VMEM((bblk, padr + T, cout_p), x.dtype)],
        ),
        compiler_params=pltpu.CompilerParams(dimension_semantics=("parallel",)),
    )(*args)


# -----------------------------------------------------------------------------
# Kernel 2: _average_batch (per-sample masked mean over the first lengths[b]
# timesteps) fused with the final Linear classifier.  Whole batch in one step:
# masked means for all samples, then a single (B, C) x (C, NC) matmul.
# -----------------------------------------------------------------------------
def _consensus_linear_kernel(len_ref, x_ref, w_ref, b_ref, o_ref):
    B, T, _ = x_ref.shape
    x = x_ref[...].astype(jnp.float32)                        # (B, T, C)
    Li = len_ref[...]                                         # (B, 1, 1) int32
    Lf = Li.astype(jnp.float32)
    t_idx = jax.lax.broadcasted_iota(jnp.int32, (B, T, 1), 1)
    # masked mean weights; L == 0 gives an all-zero mean (reference is NaN there).
    w_mask = jnp.where(t_idx < Li, 1.0 / Lf, 0.0)             # (B, T, 1)
    mean = jnp.sum(x * w_mask, axis=1)                        # (B, C)
    out = jnp.dot(mean, w_ref[...],
                  preferred_element_type=jnp.float32) + b_ref[...]
    o_ref[...] = out.astype(o_ref.dtype)


def consensus_linear(x, lengths, w, b):
    """x: (B, T, C); lengths: (B,); w: (C, NCp); b: (1, NCp) -> (B, NCp)."""
    B, T, C = x.shape
    NCp = w.shape[1]
    lengths3 = lengths.reshape(B, 1, 1).astype(jnp.int32)
    return pl.pallas_call(
        _consensus_linear_kernel,
        out_shape=jax.ShapeDtypeStruct((B, NCp), jnp.float32),
        grid_spec=pltpu.PrefetchScalarGridSpec(
            num_scalar_prefetch=0,
            grid=(1,),
            in_specs=[
                pl.BlockSpec((B, 1, 1), lambda i: (0, 0, 0)),
                pl.BlockSpec((B, T, C), lambda i: (0, 0, 0)),
                pl.BlockSpec((C, NCp), lambda i: (0, 0)),
                pl.BlockSpec((1, NCp), lambda i: (0, 0)),
            ],
            out_specs=pl.BlockSpec((B, NCp), lambda i: (0, 0)),
        ),
        compiler_params=pltpu.CompilerParams(dimension_semantics=("arbitrary",)),
    )(lengths3, x, w, b)


# -----------------------------------------------------------------------------
# Parameter setup (deterministic, synthetic) with eval-mode BatchNorm folded
# into the conv weights/bias (per-branch, unpadded -- used by the JAX reference).
# -----------------------------------------------------------------------------
def make_params(key, input_size, num_channels, kernel_sizes, num_classes):
    num_kernels = len(kernel_sizes)
    keys = iter(jax.random.split(key, 256))

    def normal(shape, scale=0.1):
        return scale * jax.random.normal(next(keys), shape, jnp.float32)

    def conv_bn_folded(cin, cout, k):
        w = normal((k, cin, cout))          # Conv1d weight laid out (K, Cin, Cout)
        b = normal((cout,))
        gamma = 1.0 + normal((cout,), 0.05)
        beta = normal((cout,), 0.05)
        r_mean = normal((cout,), 0.05)
        r_var = 1.0 + 0.1 * jax.random.uniform(next(keys), (cout,), jnp.float32)
        scale = gamma / jnp.sqrt(r_var + 1e-5)
        return w * scale, (b - r_mean) * scale + beta

    layers = []
    for i, out_ch in enumerate(num_channels):
        in_ch = input_size if i == 0 else num_channels[i - 1]
        br = out_ch // num_kernels          # per-branch output channels
        dilation = 2 ** i
        stage0 = [conv_bn_folded(in_ch, br, k) for k in kernel_sizes]
        stage1 = [conv_bn_folded(out_ch, br, k) for k in kernel_sizes]
        # downsample condition as in the baseline MultibranchTemporalBlock
        if (in_ch // num_kernels) != out_ch:
            downsample = (normal((1, in_ch, out_ch)), normal((out_ch,)))
        else:
            downsample = None
        layers.append(dict(dilation=dilation, stage0=stage0, stage1=stage1,
                           downsample=downsample))
    fc_w = normal((num_channels[-1], num_classes))
    fc_b = normal((num_classes,))
    return dict(layers=layers, fc_w=fc_w, fc_b=fc_b)


# -----------------------------------------------------------------------------
# Build fused / lane-padded parameters for the Pallas kernels:
#   * per-stage branch weights are padded with LEADING zero taps to K_max and
#     concatenated along the output-channel axis,
#   * all channel dims are zero-padded to multiples of 128 lanes (zeros propagate
#     as zeros through conv+relu+residual, so real channels are unaffected).
# -----------------------------------------------------------------------------
def build_fused_params(params, input_size, lane=LANE, dtype=jnp.float32):
    fused_layers = []
    cin_real = input_size
    for layer in params['layers']:
        stage0, stage1 = layer['stage0'], layer['stage1']
        kmax = max(w.shape[0] for (w, _) in stage0 + stage1)
        out_real = sum(w.shape[-1] for (w, _) in stage0)      # out_ch of the block
        cin_p = _round_up(cin_real, lane)
        cout_p = _round_up(out_real, lane)

        def fuse_stage(stage, in_p):
            w_full = jnp.zeros((kmax, in_p, cout_p), jnp.float32)
            b_full = jnp.zeros((cout_p,), jnp.float32)
            col = 0
            for (w, b) in stage:
                k, ci, co = w.shape
                # leading zero taps: original tap j goes to fused tap j + (kmax - k)
                w_full = w_full.at[kmax - k:, :ci, col:col + co].set(w)
                b_full = b_full.at[col:col + co].set(b)
                col += co
            return w_full.astype(dtype), b_full.reshape(1, cout_p)

        w0, b0 = fuse_stage(stage0, cin_p)
        w1, b1 = fuse_stage(stage1, cout_p)

        if layer['downsample'] is not None:
            dw, db = layer['downsample']                       # (1, cin, out), (out,)
            wd = jnp.zeros((1, cin_p, cout_p), jnp.float32)
            wd = wd.at[:, :cin_real, :out_real].set(dw).astype(dtype)
            bd = jnp.zeros((cout_p,), jnp.float32).at[:out_real].set(db)
            bd = bd.reshape(1, cout_p)
        else:
            wd = bd = None

        fused_layers.append(dict(dilation=layer['dilation'], kmax=kmax,
                                 w0=w0, b0=b0, w1=w1, b1=b1, wd=wd, bd=bd))
        cin_real = out_real

    c_last = cin_real
    c_last_p = _round_up(c_last, lane)
    nc = params['fc_w'].shape[1]
    nc_p = _round_up(nc, lane)
    fcw = jnp.zeros((c_last_p, nc_p), jnp.float32)
    fcw = fcw.at[:c_last, :nc].set(params['fc_w'])
    fcb = jnp.zeros((nc_p,), jnp.float32).at[:nc].set(params['fc_b']).reshape(1, nc_p)
    return dict(layers=fused_layers, fc_w=fcw, fc_b=fcb, nc=nc,
                cin0_p=_round_up(input_size, lane), dtype=dtype)


# -----------------------------------------------------------------------------
# Full forward pass: one fused Pallas kernel per TCN block + one consensus kernel.
# TODO(synk): compute_dtype=jnp.bfloat16 is supported (f32 accumulation kept) but the
# self-check below runs the f32 path.
# -----------------------------------------------------------------------------
def multiscale_multibranch_tcn_forward(fused, x, lengths):
    B, T, C = x.shape
    cdtype = fused['dtype']
    # one-time zero pad of the raw input channels up to the lane multiple
    x_p = jnp.pad(x, ((0, 0), (0, 0), (0, fused['cin0_p'] - C))).astype(cdtype)
    bblk = _pick_batch_block(B, T)
    out = x_p
    for layer in fused['layers']:
        out = tcn_block(out, layer, bblk=bblk)
    logits_p = consensus_linear(out, lengths, fused['fc_w'], fused['fc_b'])
    return logits_p[:, :fused['nc']]


# -----------------------------------------------------------------------------
# Pure-JAX reference (same math, per-branch unpadded weights) for correctness.
# -----------------------------------------------------------------------------
def _ref_causal_conv(x, w, b, dilation, relu):
    B, T, _ = x.shape
    K = w.shape[0]
    pad = (K - 1) * dilation
    x_pad = jnp.pad(x, ((0, 0), (pad, 0), (0, 0)))
    acc = jnp.zeros((B, T, w.shape[-1]), jnp.float32) + b
    for j in range(K):
        acc = acc + jnp.einsum('btc,cd->btd',
                               x_pad[:, j * dilation:j * dilation + T, :], w[j])
    return jnp.maximum(acc, 0.0) if relu else acc


def _ref_forward(params, x, lengths):
    out = x
    for layer in params['layers']:
        d = layer['dilation']
        out0 = jnp.concatenate([_ref_causal_conv(out, w, b, d, True)
                                for (w, b) in layer['stage0']], axis=-1)
        out1 = jnp.concatenate([_ref_causal_conv(out0, w, b, d, True)
                                for (w, b) in layer['stage1']], axis=-1)
        if layer['downsample'] is not None:
            dw, db = layer['downsample']
            res = _ref_causal_conv(out, dw, db, 1, False)
        else:
            res = out
        out = jnp.maximum(out1 + res, 0.0)
    t = jnp.arange(out.shape[1])
    mask = (t[None, :, None] < lengths[:, None, None]).astype(jnp.float32)
    mean = jnp.sum(out * mask, axis=1) / lengths[:, None].astype(jnp.float32)
    return mean @ params['fc_w'] + params['fc_b']


if __name__ == "__main__":
    B, T = 2, 8
    input_size = 32
    num_channels = [48, 48]
    kernel_sizes = [3, 5]          # tcn_options['kernel_size']
    num_classes = 10

    key = jax.random.PRNGKey(0)
    pkey, xkey = jax.random.split(key)
    params = make_params(pkey, input_size, num_channels, kernel_sizes, num_classes)
    fused = build_fused_params(params, input_size, dtype=jnp.float32)

    x = jax.random.normal(xkey, (B, T, input_size), jnp.float32)   # (B, T, C)
    lengths = jnp.array([8, 5], jnp.int32)

    out = multiscale_multibranch_tcn_forward(fused, x, lengths)
    out = jax.block_until_ready(out)
    assert out.shape == (B, num_classes)

    ref = _ref_forward(params, x, lengths)
    if not np.allclose(np.asarray(out), np.asarray(ref), atol=1e-3, rtol=1e-3):
        raise SystemExit("Pallas result does not match JAX reference")

    print("KERNEL_OK")
</pallas_src>

<mosaic_0001>
module attributes {stable_mosaic.version = 11 : i64} {
  func.func @_tcn_block_kernel(%arg0: i32, %arg1: memref<2x8x128xf32, #tpu.memory_space<vmem>>, %arg2: memref<5x128x128xf32, #tpu.memory_space<vmem>>, %arg3: memref<1x128xf32, #tpu.memory_space<vmem>>, %arg4: memref<5x128x128xf32, #tpu.memory_space<vmem>>, %arg5: memref<1x128xf32, #tpu.memory_space<vmem>>, %arg6: memref<1x128x128xf32, #tpu.memory_space<vmem>>, %arg7: memref<1x128xf32, #tpu.memory_space<vmem>>, %arg8: memref<2x8x128xf32, #tpu.memory_space<vmem>>, %arg9: memref<2x16x128xf32, #tpu.memory_space<vmem>>, %arg10: memref<2x16x128xf32, #tpu.memory_space<vmem>>) attributes {dimension_semantics = [#tpu.dimension_semantics<parallel>], iteration_bounds = array<i64: 1>, scalar_prefetch = 0 : i64, scratch_operands = 2 : i64, tpu.core_type = #tpu.core_type<tc>, window_params = [{transform_indices = @transform_0, window_bounds = array<i64: 2, 8, 128>}, {pipeline_mode = #tpu.pipeline_mode<synchronous>, transform_indices = @transform_1, window_bounds = array<i64: 5, 128, 128>}, {pipeline_mode = #tpu.pipeline_mode<synchronous>, transform_indices = @transform_2, window_bounds = array<i64: 1, 128>}, {pipeline_mode = #tpu.pipeline_mode<synchronous>, transform_indices = @transform_3, window_bounds = array<i64: 5, 128, 128>}, {pipeline_mode = #tpu.pipeline_mode<synchronous>, transform_indices = @transform_4, window_bounds = array<i64: 1, 128>}, {pipeline_mode = #tpu.pipeline_mode<synchronous>, transform_indices = @transform_5, window_bounds = array<i64: 1, 128, 128>}, {pipeline_mode = #tpu.pipeline_mode<synchronous>, transform_indices = @transform_6, window_bounds = array<i64: 1, 128>}, {transform_indices = @transform_7, window_bounds = array<i64: 2, 8, 128>}]} {
    %c0 = arith.constant 0 : index
    %c0_0 = arith.constant 0 : index
    %c0_1 = arith.constant 0 : index
    %0 = vector.load %arg1[%c0, %c0_0, %c0_1] : memref<2x8x128xf32, #tpu.memory_space<vmem>>, vector<2x8x128xf32>
    %1 = vector.shape_cast %0 : vector<2x8x128xf32> to vector<16x128xf32>
    %c0_i32 = arith.constant 0 : i32
    %2 = arith.cmpi eq, %arg0, %c0_i32 : i32
    %3 = arith.extui %2 : i1 to i32
    %c0_i32_2 = arith.constant 0 : i32
    %4 = arith.cmpi ne, %3, %c0_i32_2 : i32
    scf.if %4 {
      %cst_86 = arith.constant 0.000000e+00 : f32
      %89 = vector.broadcast %cst_86 : f32 to vector<2x8x128xf32>
      %c0_87 = arith.constant 0 : index
      %c0_88 = arith.constant 0 : index
      %c0_89 = arith.constant 0 : index
      %90 = vector.load %arg9[%c0_87, %c0_88, %c0_89] : memref<2x16x128xf32, #tpu.memory_space<vmem>>, vector<2x8x128xf32>
      tpu.vector_store %arg9[%c0_87, %c0_88, %c0_89], %89 {strides = array<i32>} : memref<2x16x128xf32, #tpu.memory_space<vmem>>, vector<2x8x128xf32>,
      %cst_90 = arith.constant 0.000000e+00 : f32
      %91 = vector.broadcast %cst_90 : f32 to vector<2x8x128xf32>
      %c0_91 = arith.constant 0 : index
      %c0_92 = arith.constant 0 : index
      %c0_93 = arith.constant 0 : index
      %92 = vector.load %arg10[%c0_91, %c0_92, %c0_93] : memref<2x16x128xf32, #tpu.memory_space<vmem>>, vector<2x8x128xf32>
      tpu.vector_store %arg10[%c0_91, %c0_92, %c0_93], %91 {strides = array<i32>} : memref<2x16x128xf32, #tpu.memory_space<vmem>>, vector<2x8x128xf32>,
    } else {
    }
    %c0_3 = arith.constant 0 : index
    %c8 = arith.constant 8 : index
    %c0_4 = arith.constant 0 : index
    %5 = vector.load %arg9[%c0_3, %c8, %c0_4] : memref<2x16x128xf32, #tpu.memory_space<vmem>>, vector<2x8x128xf32>
    tpu.vector_store %arg9[%c0_3, %c8, %c0_4], %0 {strides = array<i32>} : memref<2x16x128xf32, #tpu.memory_space<vmem>>, vector<2x8x128xf32>,
    %c0_5 = arith.constant 0 : index
    %c0_6 = arith.constant 0 : index
    %6 = vector.load %arg3[%c0_5, %c0_6] : memref<1x128xf32, #tpu.memory_space<vmem>>, vector<1x128xf32>
    %7 = vector.shape_cast %6 : vector<1x128xf32> to vector<1x128xf32>
    %8 = vector.broadcast %7 : vector<1x128xf32> to vector<16x128xf32>
    %c0_7 = arith.constant 0 : index
    %c4 = arith.constant 4 : index
    %c0_8 = arith.constant 0 : index
    %9 = vector.load %arg9[%c0_7, %c4, %c0_8] : memref<2x16x128xf32, #tpu.memory_space<vmem>>, vector<2x8x128xf32>
    %10 = vector.shape_cast %9 : vector<2x8x128xf32> to vector<16x128xf32>
    %c0_9 = arith.constant 0 : index
    %c0_10 = arith.constant 0 : index
    %c0_11 = arith.constant 0 : index
    %11 = vector.load %arg2[%c0_9, %c0_10, %c0_11] : memref<5x128x128xf32, #tpu.memory_space<vmem>>, vector<1x128x128xf32>
    %12 = vector.shape_cast %11 : vector<1x128x128xf32> to vector<128x128xf32>
    %cst = arith.constant dense<0.000000e+00> : vector<16x128xf32>
    %13 = tpu.matmul %10, %12, %cst {dimension_numbers = #tpu.dot_dimension_numbers<[1], [0], [0], [1], [0, 0, 1, 1], [], []>} : vector<16x128xf32>, vector<128x128xf32>, vector<16x128xf32> -> vector<16x128xf32>
    %14 = arith.addf %8, %13 : vector<16x128xf32>
    %c0_12 = arith.constant 0 : index
    %c5 = arith.constant 5 : index
    %c0_13 = arith.constant 0 : index
    %15 = vector.load %arg9[%c0_12, %c5, %c0_13] : memref<2x16x128xf32, #tpu.memory_space<vmem>>, vector<2x8x128xf32>
    %16 = vector.shape_cast %15 : vector<2x8x128xf32> to vector<16x128xf32>
    %c1 = arith.constant 1 : index
    %c0_14 = arith.constant 0 : index
    %c0_15 = arith.constant 0 : index
    %17 = vector.load %arg2[%c1, %c0_14, %c0_15] : memref<5x128x128xf32, #tpu.memory_space<vmem>>, vector<1x128x128xf32>
    %18 = vector.shape_cast %17 : vector<1x128x128xf32> to vector<128x128xf32>
    %cst_16 = arith.constant dense<0.000000e+00> : vector<16x128xf32>
    %19 = tpu.matmul %16, %18, %cst_16 {dimension_numbers = #tpu.dot_dimension_numbers<[1], [0], [0], [1], [0, 0, 1, 1], [], []>} : vector<16x128xf32>, vector<128x128xf32>, vector<16x128xf32> -> vector<16x128xf32>
    %20 = arith.addf %14, %19 : vector<16x128xf32>
    %c0_17 = arith.constant 0 : index
    %c6 = arith.constant 6 : index
    %c0_18 = arith.constant 0 : index
    %21 = vector.load %arg9[%c0_17, %c6, %c0_18] : memref<2x16x128xf32, #tpu.memory_space<vmem>>, vector<2x8x128xf32>
    %22 = vector.shape_cast %21 : vector<2x8x128xf32> to vector<16x128xf32>
    %c2 = arith.constant 2 : index
    %c0_19 = arith.constant 0 : index
    %c0_20 = arith.constant 0 : index
    %23 = vector.load %arg2[%c2, %c0_19, %c0_20] : memref<5x128x128xf32, #tpu.memory_space<vmem>>, vector<1x128x128xf32>
    %24 = vector.shape_cast %23 : vector<1x128x128xf32> to vector<128x128xf32>
    %cst_21 = arith.constant dense<0.000000e+00> : vector<16x128xf32>
    %25 = tpu.matmul %22, %24, %cst_21 {dimension_numbers = #tpu.dot_dimension_numbers<[1], [0], [0], [1], [0, 0, 1, 1], [], []>} : vector<16x128xf32>, vector<128x128xf32>, vector<16x128xf32> -> vector<16x128xf32>
    %26 = arith.addf %20, %25 : vector<16x128xf32>
    %c0_22 = arith.constant 0 : index
    %c7 = arith.constant 7 : index
    %c0_23 = arith.constant 0 : index
    %27 = vector.load %arg9[%c0_22, %c7, %c0_23] : memref<2x16x128xf32, #tpu.memory_space<vmem>>, vector<2x8x128xf32>
    %28 = vector.shape_cast %27 : vector<2x8x128xf32> to vector<16x128xf32>
    %c3 = arith.constant 3 : index
    %c0_24 = arith.constant 0 : index
    %c0_25 = arith.constant 0 : index
    %29 = vector.load %arg2[%c3, %c0_24, %c0_25] : memref<5x128x128xf32, #tpu.memory_space<vmem>>, vector<1x128x128xf32>
    %30 = vector.shape_cast %29 : vector<1x128x128xf32> to vector<128x128xf32>
    %cst_26 = arith.constant dense<0.000000e+00> : vector<16x128xf32>
    %31 = tpu.matmul %28, %30, %cst_26 {dimension_numbers = #tpu.dot_dimension_numbers<[1], [0], [0], [1], [0, 0, 1, 1], [], []>} : vector<16x128xf32>, vector<128x128xf32>, vector<16x128xf32> -> vector<16x128xf32>
    %32 = arith.addf %26, %31 : vector<16x128xf32>
    %c0_27 = arith.constant 0 : index
    %c8_28 = arith.constant 8 : index
    %c0_29 = arith.constant 0 : index
    %33 = vector.load %arg9[%c0_27, %c8_28, %c0_29] : memref<2x16x128xf32, #tpu.memory_space<vmem>>, vector<2x8x128xf32>
    %34 = vector.shape_cast %33 : vector<2x8x128xf32> to vector<16x128xf32>
    %c4_30 = arith.constant 4 : index
    %c0_31 = arith.constant 0 : index
    %c0_32 = arith.constant 0 : index
    %35 = vector.load %arg2[%c4_30, %c0_31, %c0_32] : memref<5x128x128xf32, #tpu.memory_space<vmem>>, vector<1x128x128xf32>
    %36 = vector.shape_cast %35 : vector<1x128x128xf32> to vector<128x128xf32>
    %cst_33 = arith.constant dense<0.000000e+00> : vector<16x128xf32>
    %37 = tpu.matmul %34, %36, %cst_33 {dimension_numbers = #tpu.dot_dimension_numbers<[1], [0], [0], [1], [0, 0, 1, 1], [], []>} : vector<16x128xf32>, vector<128x128xf32>, vector<16x128xf32> -> vector<16x128xf32>
    %38 = arith.addf %32, %37 : vector<16x128xf32>
    %cst_34 = arith.constant 0.000000e+00 : f32
    %39 = vector.broadcast %cst_34 : f32 to vector<16x128xf32>
    %40 = arith.maximumf %38, %39 : vector<16x128xf32>
    %41 = vector.shape_cast %40 : vector<16x128xf32> to vector<2x8x128xf32>
    %c0_35 = arith.constant 0 : index
    %c8_36 = arith.constant 8 : index
    %c0_37 = arith.constant 0 : index
    %42 = vector.load %arg10[%c0_35, %c8_36, %c0_37] : memref<2x16x128xf32, #tpu.memory_space<vmem>>, vector<2x8x128xf32>
    tpu.vector_store %arg10[%c0_35, %c8_36, %c0_37], %41 {strides = array<i32>} : memref<2x16x128xf32, #tpu.memory_space<vmem>>, vector<2x8x128xf32>,
    %c0_38 = arith.constant 0 : index
    %c0_39 = arith.constant 0 : index
    %43 = vector.load %arg5[%c0_38, %c0_39] : memref<1x128xf32, #tpu.memory_space<vmem>>, vector<1x128xf32>
    %44 = vector.shape_cast %43 : vector<1x128xf32> to vector<1x128xf32>
    %45 = vector.broadcast %44 : vector<1x128xf32> to vector<16x128xf32>
    %c0_40 = arith.constant 0 : index
    %c4_41 = arith.constant 4 : index
    %c0_42 = arith.constant 0 : index
    %46 = vector.load %arg10[%c0_40, %c4_41, %c0_42] : memref<2x16x128xf32, #tpu.memory_space<vmem>>, vector<2x8x128xf32>
    %47 = vector.shape_cast %46 : vector<2x8x128xf32> to vector<16x128xf32>
    %c0_43 = arith.constant 0 : index
    %c0_44 = arith.constant 0 : index
    %c0_45 = arith.constant 0 : index
    %48 = vector.load %arg4[%c0_43, %c0_44, %c0_45] : memref<5x128x128xf32, #tpu.memory_space<vmem>>, vector<1x128x128xf32>
    %49 = vector.shape_cast %48 : vector<1x128x128xf32> to vector<128x128xf32>
    %cst_46 = arith.constant dense<0.000000e+00> : vector<16x128xf32>
    %50 = tpu.matmul %47, %49, %cst_46 {dimension_numbers = #tpu.dot_dimension_numbers<[1], [0], [0], [1], [0, 0, 1, 1], [], []>} : vector<16x128xf32>, vector<128x128xf32>, vector<16x128xf32> -> vector<16x128xf32>
    %51 = arith.addf %45, %50 : vector<16x128xf32>
    %c0_47 = arith.constant 0 : index
    %c5_48 = arith.constant 5 : index
    %c0_49 = arith.constant 0 : index
    %52 = vector.load %arg10[%c0_47, %c5_48, %c0_49] : memref<2x16x128xf32, #tpu.memory_space<vmem>>, vector<2x8x128xf32>
    %53 = vector.shape_cast %52 : vector<2x8x128xf32> to vector<16x128xf32>
    %c1_50 = arith.constant 1 : index
    %c0_51 = arith.constant 0 : index
    %c0_52 = arith.constant 0 : index
    %54 = vector.load %arg4[%c1_50, %c0_51, %c0_52] : memref<5x128x128xf32, #tpu.memory_space<vmem>>, vector<1x128x128xf32>
    %55 = vector.shape_cast %54 : vector<1x128x128xf32> to vector<128x128xf32>
    %cst_53 = arith.constant dense<0.000000e+00> : vector<16x128xf32>
    %56 = tpu.matmul %53, %55, %cst_53 {dimension_numbers = #tpu.dot_dimension_numbers<[1], [0], [0], [1], [0, 0, 1, 1], [], []>} : vector<16x128xf32>, vector<128x128xf32>, vector<16x128xf32> -> vector<16x128xf32>
    %57 = arith.addf %51, %56 : vector<16x128xf32>
    %c0_54 = arith.constant 0 : index
    %c6_55 = arith.constant 6 : index
    %c0_56 = arith.constant 0 : index
    %58 = vector.load %arg10[%c0_54, %c6_55, %c0_56] : memref<2x16x128xf32, #tpu.memory_space<vmem>>, vector<2x8x128xf32>
    %59 = vector.shape_cast %58 : vector<2x8x128xf32> to vector<16x128xf32>
    %c2_57 = arith.constant 2 : index
    %c0_58 = arith.constant 0 : index
    %c0_59 = arith.constant 0 : index
    %60 = vector.load %arg4[%c2_57, %c0_58, %c0_59] : memref<5x128x128xf32, #tpu.memory_space<vmem>>, vector<1x128x128xf32>
    %61 = vector.shape_cast %60 : vector<1x128x128xf32> to vector<128x128xf32>
    %cst_60 = arith.constant dense<0.000000e+00> : vector<16x128xf32>
    %62 = tpu.matmul %59, %61, %cst_60 {dimension_numbers = #tpu.dot_dimension_numbers<[1], [0], [0], [1], [0, 0, 1, 1], [], []>} : vector<16x128xf32>, vector<128x128xf32>, vector<16x128xf32> -> vector<16x128xf32>
    %63 = arith.addf %57, %62 : vector<16x128xf32>
    %c0_61 = arith.constant 0 : index
    %c7_62 = arith.constant 7 : index
    %c0_63 = arith.constant 0 : index
    %64 = vector.load %arg10[%c0_61, %c7_62, %c0_63] : memref<2x16x128xf32, #tpu.memory_space<vmem>>, vector<2x8x128xf32>
    %65 = vector.shape_cast %64 : vector<2x8x128xf32> to vector<16x128xf32>
    %c3_64 = arith.constant 3 : index
    %c0_65 = arith.constant 0 : index
    %c0_66 = arith.constant 0 : index
    %66 = vector.load %arg4[%c3_64, %c0_65, %c0_66] : memref<5x128x128xf32, #tpu.memory_space<vmem>>, vector<1x128x128xf32>
    %67 = vector.shape_cast %66 : vector<1x128x128xf32> to vector<128x128xf32>
    %cst_67 = arith.constant dense<0.000000e+00> : vector<16x128xf32>
    %68 = tpu.matmul %65, %67, %cst_67 {dimension_numbers = #tpu.dot_dimension_numbers<[1], [0], [0], [1], [0, 0, 1, 1], [], []>} : vector<16x128xf32>, vector<128x128xf32>, vector<16x128xf32> -> vector<16x128xf32>
    %69 = arith.addf %63, %68 : vector<16x128xf32>
    %c0_68 = arith.constant 0 : index
    %c8_69 = arith.constant 8 : index
    %c0_70 = arith.constant 0 : index
    %70 = vector.load %arg10[%c0_68, %c8_69, %c0_70] : memref<2x16x128xf32, #tpu.memory_space<vmem>>, vector<2x8x128xf32>
    %71 = vector.shape_cast %70 : vector<2x8x128xf32> to vector<16x128xf32>
    %c4_71 = arith.constant 4 : index
    %c0_72 = arith.constant 0 : index
    %c0_73 = arith.constant 0 : index
    %72 = vector.load %arg4[%c4_71, %c0_72, %c0_73] : memref<5x128x128xf32, #tpu.memory_space<vmem>>, vector<1x128x128xf32>
    %73 = vector.shape_cast %72 : vector<1x128x128xf32> to vector<128x128xf32>
    %cst_74 = arith.constant dense<0.000000e+00> : vector<16x128xf32>
    %74 = tpu.matmul %71, %73, %cst_74 {dimension_numbers = #tpu.dot_dimension_numbers<[1], [0], [0], [1], [0, 0, 1, 1], [], []>} : vector<16x128xf32>, vector<128x128xf32>, vector<16x128xf32> -> vector<16x128xf32>
    %75 = arith.addf %69, %74 : vector<16x128xf32>
    %cst_75 = arith.constant 0.000000e+00 : f32
    %76 = vector.broadcast %cst_75 : f32 to vector<16x128xf32>
    %77 = arith.maximumf %75, %76 : vector<16x128xf32>
    %c0_76 = arith.constant 0 : index
    %c0_77 = arith.constant 0 : index
    %c0_78 = arith.constant 0 : index
    %78 = vector.load %arg6[%c0_76, %c0_77, %c0_78] : memref<1x128x128xf32, #tpu.memory_space<vmem>>, vector<1x128x128xf32>
    %79 = vector.shape_cast %78 : vector<1x128x128xf32> to vector<128x128xf32>
    %cst_79 = arith.constant dense<0.000000e+00> : vector<16x128xf32>
    %80 = tpu.matmul %1, %79, %cst_79 {dimension_numbers = #tpu.dot_dimension_numbers<[1], [0], [0], [1], [0, 0, 1, 1], [], []>} : vector<16x128xf32>, vector<128x128xf32>, vector<16x128xf32> -> vector<16x128xf32>
    %c0_80 = arith.constant 0 : index
    %c0_81 = arith.constant 0 : index
    %81 = vector.load %arg7[%c0_80, %c0_81] : memref<1x128xf32, #tpu.memory_space<vmem>>, vector<1x128xf32>
    %82 = vector.broadcast %81 : vector<1x128xf32> to vector<16x128xf32>
    %83 = arith.addf %80, %82 : vector<16x128xf32>
    %84 = arith.addf %77, %83 : vector<16x128xf32>
    %cst_82 = arith.constant 0.000000e+00 : f32
    %85 = vector.broadcast %cst_82 : f32 to vector<16x128xf32>
    %86 = arith.maximumf %84, %85 : vector<16x128xf32>
    %87 = vector.shape_cast %86 : vector<16x128xf32> to vector<2x8x128xf32>
    %c0_83 = arith.constant 0 : index
    %c0_84 = arith.constant 0 : index
    %c0_85 = arith.constant 0 : index
    %88 = vector.load %arg8[%c0_83, %c0_84, %c0_85] : memref<2x8x128xf32, #tpu.memory_space<vmem>>, vector<2x8x128xf32>
    tpu.vector_store %arg8[%c0_83, %c0_84, %c0_85], %87 {strides = array<i32>} : memref<2x8x128xf32, #tpu.memory_space<vmem>>, vector<2x8x128xf32>,
    return
  }
  func.func @transform_0(%arg0: i32) -> (i32, i32, i32) {
    %c0_i32 = arith.constant 0 : i32
    %c0_i32_0 = arith.constant 0 : i32
    %c0_i32_1 = arith.constant 0 : i32
    return %arg0, %c0_i32, %c0_i32_0 : i32, i32, i32
  }
  func.func @transform_1(%arg0: i32) -> (i32, i32, i32) {
    %c0_i32 = arith.constant 0 : i32
    %c0_i32_0 = arith.constant 0 : i32
    %c0_i32_1 = arith.constant 0 : i32
    %c0_i32_2 = arith.constant 0 : i32
    return %c0_i32, %c0_i32_0, %c0_i32_1 : i32, i32, i32
  }
  func.func @transform_2(%arg0: i32) -> (i32, i32) {
    %c0_i32 = arith.constant 0 : i32
    %c0_i32_0 = arith.constant 0 : i32
    %c0_i32_1 = arith.constant 0 : i32
    return %c0_i32, %c0_i32_0 : i32, i32
  }
  func.func @transform_3(%arg0: i32) -> (i32, i32, i32) {
    %c0_i32 = arith.constant 0 : i32
    %c0_i32_0 = arith.constant 0 : i32
    %c0_i32_1 = arith.constant 0 : i32
    %c0_i32_2 = arith.constant 0 : i32
    return %c0_i32, %c0_i32_0, %c0_i32_1 : i32, i32, i32
  }
  func.func @transform_4(%arg0: i32) -> (i32, i32) {
    %c0_i32 = arith.constant 0 : i32
    %c0_i32_0 = arith.constant 0 : i32
    %c0_i32_1 = arith.constant 0 : i32
    return %c0_i32, %c0_i32_0 : i32, i32
  }
  func.func @transform_5(%arg0: i32) -> (i32, i32, i32) {
    %c0_i32 = arith.constant 0 : i32
    %c0_i32_0 = arith.constant 0 : i32
    %c0_i32_1 = arith.constant 0 : i32
    %c0_i32_2 = arith.constant 0 : i32
    return %c0_i32, %c0_i32_0, %c0_i32_1 : i32, i32, i32
  }
  func.func @transform_6(%arg0: i32) -> (i32, i32) {
    %c0_i32 = arith.constant 0 : i32
    %c0_i32_0 = arith.constant 0 : i32
    %c0_i32_1 = arith.constant 0 : i32
    return %c0_i32, %c0_i32_0 : i32, i32
  }
  func.func @transform_7(%arg0: i32) -> (i32, i32, i32) {
    %c0_i32 = arith.constant 0 : i32
    %c0_i32_0 = arith.constant 0 : i32
    %c0_i32_1 = arith.constant 0 : i32
    return %arg0, %c0_i32, %c0_i32_0 : i32, i32, i32
  }
}

</mosaic_0001>

<llo_original>
// kernel: tpu_custom_call.1
$region0: #{tpu_custom_call.1}
  #allocation0 [shape = 'u32[]', space=smem, size = 0x4, offset = 0x4, fixed_abs, tag = 'smem constant byte address 0x4 - core index']
  #allocation1 [shape = 'u32[72,128]{1,0:T(1,128)}', space=vmem, size = 0x9000, scoped, tag = 'internal scratch']
  #allocation2 [shape = 'f32[2,16,128]{2,1,0:T(8,128)}', space=vmem, size = 0x4000, scoped, tag = 'scratch operand']
  #allocation3 [shape = 'f32[2,16,128]{2,1,0:T(8,128)}', space=vmem, size = 0x4000, scoped, tag = 'scratch operand']
  %s0 = inlined_call_operand.hbm [shape: f32[2,8,128], index: 0, kind: input, shape index: {}]
  %s1 = inlined_call_operand.hbm [shape: f32[5,128,128], index: 1, kind: input, shape index: {}]
  %s2 = inlined_call_operand.vmem [shape: f32[1,128], index: 2, kind: input, shape index: {}]
  %s3 = inlined_call_operand.hbm [shape: f32[5,128,128], index: 3, kind: input, shape index: {}]
  %s4 = inlined_call_operand.vmem [shape: f32[1,128], index: 4, kind: input, shape index: {}]
  %s5 = inlined_call_operand.hbm [shape: f32[1,128,128], index: 5, kind: input, shape index: {}]
  %s6 = inlined_call_operand.vmem [shape: f32[1,128], index: 6, kind: input, shape index: {}]
  %s7 = inlined_call_operand.hbm [shape: f32[2,8,128], index: 7, kind: output, shape index: {}]
  %s8 = sld [smem:[#allocation0]]
  $region58: #{tpu_custom_call.1} parent=0
    _
  %s10 = ssub.s32 1, %s8
  %s11 = scalar_select 0, %s10, %s8
  $region1: #{tpu_custom_call.1} parent=0
    #allocation4 [shape = 'u8[8192]{0}', space=vmem, size = 0x2000, scoped, tag = 'input window, operand 0, single buffered']
    #allocation5 [shape = 's32[1]{0}', space=sflag, size = 0x4, scoped, tag = 'scoped memory for tpu_custom_call.1']
    #allocation6 [shape = 's32[1]{0}', space=sflag, size = 0x4, scoped, tag = 'scoped memory for tpu_custom_call.1']
    #allocation7 [shape = 'u8[327680]{0}', space=vmem, size = 0x50000, scoped, tag = 'input window, operand 1, single buffered']
    #allocation8 [shape = 's32[1]{0}', space=sflag, size = 0x4, scoped, tag = 'scoped memory for tpu_custom_call.1']
    #allocation9 [shape = 'u8[327680]{0}', space=vmem, size = 0x50000, scoped, tag = 'input window, operand 3, single buffered']
    #allocation10 [shape = 'u8[65536]{0}', space=vmem, size = 0x10000, scoped, tag = 'input window, operand 5, single buffered']
    #allocation11 [shape = 's32[1]{0}', space=sflag, size = 0x4, scoped, tag = 'scoped memory for tpu_custom_call.1']
    #allocation12 [shape = 'u8[8192]{0}', space=vmem, size = 0x2000, scoped, tag = 'output window, operand 0, single buffered']
    %12 = vsyncpa [#allocation5], 0
    %13 = vsyncpa [#allocation8], 0
    %14 = vsyncpa [#allocation11], 0
    %15 = vsyncpa [#allocation6], 0
    // Predicated region
    $region2: #{tpu_custom_call.1} parent=1 // pred_check
      _
    $region3: #{tpu_custom_call.1} parent=1 // pred_check_branch
      %17 = sbr.rel (0) target = $region5
    $region4: #{tpu_custom_call.1} parent=1 // pred_region
      %19 = vsyncadd [#allocation5], 0
      %s20 = sshll.u32 %s0, 4
      %s21 = int_to_ptr.hbm [resolvable:$true] %s20
      %s22 = sshll.u32 [#allocation4], 4
      %s23 = int_to_ptr.vmem [resolvable:$true] %s22
      %28 = dma.hbm_to_vmem [thread:$0]  %s21, 256, %s23, [#allocation5], 128, 128, 8
    $region5: #{tpu_custom_call.1} parent=1 // pred_fallthru
      _
    // Predicated region
    $region6: #{tpu_custom_call.1} parent=1 // pred_check
      _
    $region7: #{tpu_custom_call.1} parent=1 // pred_check_branch
      %30 = sbr.rel (0) target = $region9
    $region8: #{tpu_custom_call.1} parent=1 // pred_region
      %32 = vsyncadd [#allocation8], 0
      %s33 = sshll.u32 %s1, 4
      %s34 = int_to_ptr.hbm [resolvable:$true] %s33
      %s35 = sshll.u32 [#allocation7], 4
      %s36 = int_to_ptr.vmem [resolvable:$true] %s35
      %41 = dma.hbm_to_vmem [thread:$0]  %s34, 10240, %s36, [#allocation8], 128, 128, 8
    $region9: #{tpu_custom_call.1} parent=1 // pred_fallthru
      _
    // Predicated region
    $region10: #{tpu_custom_call.1} parent=1 // pred_check
      _
    $region11: #{tpu_custom_call.1} parent=1 // pred_check_branch
      %43 = sbr.rel (0) target = $region13
    $region12: #{tpu_custom_call.1} parent=1 // pred_region
      _
    $region13: #{tpu_custom_call.1} parent=1 // pred_fallthru
      _
    // Predicated region
    $region14: #{tpu_custom_call.1} parent=1 // pred_check
      _
    $region15: #{tpu_custom_call.1} parent=1 // pred_check_branch
      %45 = sbr.rel (0) target = $region17
    $region16: #{tpu_custom_call.1} parent=1 // pred_region
      %47 = vsyncadd [#allocation8], 0
      %s48 = sshll.u32 %s3, 4
      %s49 = int_to_ptr.hbm [resolvable:$true] %s48
      %s50 = sshll.u32 [#allocation9], 4
      %s51 = int_to_ptr.vmem [resolvable:$true] %s50
      %56 = dma.hbm_to_vmem [thread:$0]  %s49, 10240, %s51, [#allocation8], 128, 128, 8
    $region17: #{tpu_custom_call.1} parent=1 // pred_fallthru
      _
    // Predicated region
    $region18: #{tpu_custom_call.1} parent=1 // pred_check
      _
    $region19: #{tpu_custom_call.1} parent=1 // pred_check_branch
      %58 = sbr.rel (0) target = $region21
    $region20: #{tpu_custom_call.1} parent=1 // pred_region
      _
    $region21: #{tpu_custom_call.1} parent=1 // pred_fallthru
      _
    // Predicated region
    $region22: #{tpu_custom_call.1} parent=1 // pred_check
      _
    $region23: #{tpu_custom_call.1} parent=1 // pred_check_branch
      %60 = sbr.rel (0) target = $region25
    $region24: #{tpu_custom_call.1} parent=1 // pred_region
      %62 = vsyncadd [#allocation11], 0
      %s63 = sshll.u32 %s5, 4
      %s64 = int_to_ptr.hbm [resolvable:$true] %s63
      %s65 = sshll.u32 [#allocation10], 4
      %s66 = int_to_ptr.vmem [resolvable:$true] %s65
      %71 = dma.hbm_to_vmem [thread:$0]  %s64, 2048, %s66, [#allocation11], 128, 128, 8
    $region25: #{tpu_custom_call.1} parent=1 // pred_fallthru
      _
    // Predicated region
    $region26: #{tpu_custom_call.1} parent=1 // pred_check
      _
    $region27: #{tpu_custom_call.1} parent=1 // pred_check_branch
      %73 = sbr.rel (0) target = $region29
    $region28: #{tpu_custom_call.1} parent=1 // pred_region
      _
    $region29: #{tpu_custom_call.1} parent=1 // pred_fallthru
      _
    // Predicated region
    $region30: #{tpu_custom_call.1} parent=1 // pred_check
      _
    $region31: #{tpu_custom_call.1} parent=1 // pred_check_branch
      %75 = sbr.rel (0) target = $region33
    $region32: #{tpu_custom_call.1} parent=1 // pred_region
      %77 = dma.done [#allocation5], 256
    $region33: #{tpu_custom_call.1} parent=1 // pred_fallthru
      _
    // Predicated region
    $region34: #{tpu_custom_call.1} parent=1 // pred_check
      _
    $region35: #{tpu_custom_call.1} parent=1 // pred_check_branch
      %79 = sbr.rel (0) target = $region37
    $region36: #{tpu_custom_call.1} parent=1 // pred_region
      %81 = dma.done [#allocation8], 10240
    $region37: #{tpu_custom_call.1} parent=1 // pred_fallthru
      _
    // Predicated region
    $region38: #{tpu_custom_call.1} parent=1 // pred_check
      _
    $region39: #{tpu_custom_call.1} parent=1 // pred_check_branch
      %83 = sbr.rel (0) target = $region41
    $region40: #{tpu_custom_call.1} parent=1 // pred_region
      %85 = dma.done [#allocation8], 10240
    $region41: #{tpu_custom_call.1} parent=1 // pred_fallthru
      _
    // Predicated region
    $region42: #{tpu_custom_call.1} parent=1 // pred_check
      _
    $region43: #{tpu_custom_call.1} parent=1 // pred_check_branch
      %87 = sbr.rel (0) target = $region45
    $region44: #{tpu_custom_call.1} parent=1 // pred_region
      %89 = dma.done [#allocation11], 2048
    $region45: #{tpu_custom_call.1} parent=1 // pred_fallthru
      _
    %v90 = vld [vmem:[#allocation4] sm:$0xff]
    %v91 = vld [vmem:[#allocation4 + $0x8] sm:$0xff]
    %p92 = scmp.eq.s32.totalorder 0, 0
    // Predicated region
    $region46: #{tpu_custom_call.1} parent=1 // pred_check
      %p93 = pneg %p92
    $region47: #{tpu_custom_call.1} parent=1 // pred_check_branch
      %95 = sbr.rel (%p93) target = $region49
    $region48: #{tpu_custom_call.1} parent=1 // pred_region
      %96 = vst [vmem:[#allocation2] sm:$0xff] 0.0
      %97 = vst [vmem:[#allocation2 + $0x10] sm:$0xff] 0.0
      %98 = vst [vmem:[#allocation3] sm:$0xff] 0.0
      %99 = vst [vmem:[#allocation3 + $0x10] sm:$0xff] 0.0
    $region49: #{tpu_custom_call.1} parent=1 // pred_fallthru
      _
    %100 = vst [vmem:[#allocation2 + $0x8] sm:$0xff] %v90
    %101 = vst [vmem:[#allocation2 + $0x18] sm:$0xff] %v91
    %v102 = vld [vmem:[%s2] sm:$0x1]
    %v104 = vperm.slane %v102, 0
    %v106 = vld [vmem:[#allocation2 + $0x4] sm:$0xff]
    %v107 = vld [vmem:[#allocation2 + $0x14] sm:$0xff]
    %v108 = vld [vmem:[#allocation7] sm:$0xff]
    %v109 = vld [vmem:[#allocation7 + $0x8] sm:$0xff]
    %v110 = vld [vmem:[#allocation7 + $0x10] sm:$0xff]
    %v111 = vld [vmem:[#allocation7 + $0x18] sm:$0xff]
    %v112 = vld [vmem:[#allocation7 + $0x20] sm:$0xff]
    %v113 = vld [vmem:[#allocation7 + $0x28] sm:$0xff]
    %v114 = vld [vmem:[#allocation7 + $0x30] sm:$0xff]
    %v115 = vld [vmem:[#allocation7 + $0x38] sm:$0xff]
    %v116 = vld [vmem:[#allocation7 + $0x40] sm:$0xff]
    %v117 = vld [vmem:[#allocation7 + $0x48] sm:$0xff]
    %v118 = vld [vmem:[#allocation7 + $0x50] sm:$0xff]
    %v119 = vld [vmem:[#allocation7 + $0x58] sm:$0xff]
    %v120 = vld [vmem:[#allocation7 + $0x60] sm:$0xff]
    %v121 = vld [vmem:[#allocation7 + $0x68] sm:$0xff]
    %v122 = vld [vmem:[#allocation7 + $0x70] sm:$0xff]
    %v123 = vld [vmem:[#allocation7 + $0x78] sm:$0xff]
    %124 = vmatpush.msra.mxu0 %v123
    %125 = vmatpush.msra.mxu0 %v122
    %126 = vmatpush.msra.mxu0 %v121
    %127 = vmatpush.msra.mxu0 %v120
    %128 = vmatpush.msra.mxu0 %v119
    %129 = vmatpush.msra.mxu0 %v118
    %130 = vmatpush.msra.mxu0 %v117
    %131 = vmatpush.msra.mxu0 %v116
    %132 = vmatpush.msra.mxu0 %v115
    %133 = vmatpush.msra.mxu0 %v114
    %134 = vmatpush.msra.mxu0 %v113
    %135 = vmatpush.msra.mxu0 %v112
    %136 = vmatpush.msra.mxu0 %v111
    %137 = vmatpush.msra.mxu0 %v110
    %138 = vmatpush.msra.mxu0 %v109
    %139 = vmatpush.msra.mxu0 %v108
    %140 = vmatmul.f32.gmra.mxu0 %v106
    %v141 = vpop.f32.mrf.mxu0
    %v142 = vadd.f32 0.0, %v141
    %143 = vmatmul.f32.gmra.mxu0 %v107
    %v144 = vpop.f32.mrf.mxu0
    %v145 = vadd.f32 0.0, %v144
    %146 = vdwg.mxu0
    %v147 = vadd.f32 %v104, %v142
    %v148 = vadd.f32 %v104, %v145
    %v149 = vld [vmem:[#allocation2 + $0x5] sm:$0xff]
    %v150 = vld [vmem:[#allocation2 + $0x15] sm:$0xff]
    %s151 = scalar_lea.vmem [#allocation7], 128
    %v152 = vld [vmem:[%s151] sm:$0xff]
    %v153 = vld [vmem:[%s151 + $0x8] sm:$0xff]
    %v154 = vld [vmem:[%s151 + $0x10] sm:$0xff]
    %v155 = vld [vmem:[%s151 + $0x18] sm:$0xff]
    %v156 = vld [vmem:[%s151 + $0x20] sm:$0xff]
    %v157 = vld [vmem:[%s151 + $0x28] sm:$0xff]
    %v158 = vld [vmem:[%s151 + $0x30] sm:$0xff]
    %v159 = vld [vmem:[%s151 + $0x38] sm:$0xff]
    %v160 = vld [vmem:[%s151 + $0x40] sm:$0xff]
    %v161 = vld [vmem:[%s151 + $0x48] sm:$0xff]
    %v162 = vld [vmem:[%s151 + $0x50] sm:$0xff]
    %v163 = vld [vmem:[%s151 + $0x58] sm:$0xff]
    %v164 = vld [vmem:[%s151 + $0x60] sm:$0xff]
    %v165 = vld [vmem:[%s151 + $0x68] sm:$0xff]
    %v166 = vld [vmem:[%s151 + $0x70] sm:$0xff]
    %v167 = vld [vmem:[%s151 + $0x78] sm:$0xff]
    %168 = vmatpush.msra.mxu0 %v167
    %169 = vmatpush.msra.mxu0 %v166
    %170 = vmatpush.msra.mxu0 %v165
    %171 = vmatpush.msra.mxu0 %v164
    %172 = vmatpush.msra.mxu0 %v163
    %173 = vmatpush.msra.mxu0 %v162
    %174 = vmatpush.msra.mxu0 %v161
    %175 = vmatpush.msra.mxu0 %v160
    %176 = vmatpush.msra.mxu0 %v159
    %177 = vmatpush.msra.mxu0 %v158
    %178 = vmatpush.msra.mxu0 %v157
    %179 = vmatpush.msra.mxu0 %v156
    %180 = vmatpush.msra.mxu0 %v155
    %181 = vmatpush.msra.mxu0 %v154
    %182 = vmatpush.msra.mxu0 %v153
    %183 = vmatpush.msra.mxu0 %v152
    %184 = vmatmul.f32.gmra.mxu0 %v149
    %v185 = vpop.f32.mrf.mxu0
    %v186 = vadd.f32 0.0, %v185
    %187 = vmatmul.f32.gmra.mxu0 %v150
    %v188 = vpop.f32.mrf.mxu0
    %v189 = vadd.f32 0.0, %v188
    %190 = vdwg.mxu0
    %v191 = vadd.f32 %v147, %v186
    %v192 = vadd.f32 %v148, %v189
    %v193 = vld [vmem:[#allocation2 + $0x6] sm:$0xff]
    %v194 = vld [vmem:[#allocation2 + $0x16] sm:$0xff]
    %s195 = scalar_lea.vmem [#allocation7], 256
    %v196 = vld [vmem:[%s195] sm:$0xff]
    %v197 = vld [vmem:[%s195 + $0x8] sm:$0xff]
    %v198 = vld [vmem:[%s195 + $0x10] sm:$0xff]
    %v199 = vld [vmem:[%s195 + $0x18] sm:$0xff]
    %v200 = vld [vmem:[%s195 + $0x20] sm:$0xff]
    %v201 = vld [vmem:[%s195 + $0x28] sm:$0xff]
    %v202 = vld [vmem:[%s195 + $0x30] sm:$0xff]
    %v203 = vld [vmem:[%s195 + $0x38] sm:$0xff]
    %v204 = vld [vmem:[%s195 + $0x40] sm:$0xff]
    %v205 = vld [vmem:[%s195 + $0x48] sm:$0xff]
    %v206 = vld [vmem:[%s195 + $0x50] sm:$0xff]
    %v207 = vld [vmem:[%s195 + $0x58] sm:$0xff]
    %v208 = vld [vmem:[%s195 + $0x60] sm:$0xff]
    %v209 = vld [vmem:[%s195 + $0x68] sm:$0xff]
    %v210 = vld [vmem:[%s195 + $0x70] sm:$0xff]
    %v211 = vld [vmem:[%s195 + $0x78] sm:$0xff]
    %212 = vmatpush.msra.mxu0 %v211
    %213 = vmatpush.msra.mxu0 %v210
    %214 = vmatpush.msra.mxu0 %v209
    %215 = vmatpush.msra.mxu0 %v208
    %216 = vmatpush.msra.mxu0 %v207
    %217 = vmatpush.msra.mxu0 %v206
    %218 = vmatpush.msra.mxu0 %v205
    %219 = vmatpush.msra.mxu0 %v204
    %220 = vmatpush.msra.mxu0 %v203
    %221 = vmatpush.msra.mxu0 %v202
    %222 = vmatpush.msra.mxu0 %v201
    %223 = vmatpush.msra.mxu0 %v200
    %224 = vmatpush.msra.mxu0 %v199
    %225 = vmatpush.msra.mxu0 %v198
    %226 = vmatpush.msra.mxu0 %v197
    %227 = vmatpush.msra.mxu0 %v196
    %228 = vmatmul.f32.gmra.mxu0 %v193
    %v229 = vpop.f32.mrf.mxu0
    %v230 = vadd.f32 0.0, %v229
    %231 = vmatmul.f32.gmra.mxu0 %v194
    %v232 = vpop.f32.mrf.mxu0
    %v233 = vadd.f32 0.0, %v232
    %234 = vdwg.mxu0
    %v235 = vadd.f32 %v191, %v230
    %v236 = vadd.f32 %v192, %v233
    %v237 = vld [vmem:[#allocation2 + $0x7] sm:$0xff]
    %v238 = vld [vmem:[#allocation2 + $0x17] sm:$0xff]
    %s239 = scalar_lea.vmem [#allocation7], 384
    %v240 = vld [vmem:[%s239] sm:$0xff]
    %v241 = vld [vmem:[%s239 + $0x8] sm:$0xff]
    %v242 = vld [vmem:[%s239 + $0x10] sm:$0xff]
    %v243 = vld [vmem:[%s239 + $0x18] sm:$0xff]
    %v244 = vld [vmem:[%s239 + $0x20] sm:$0xff]
    %v245 = vld [vmem:[%s239 + $0x28] sm:$0xff]
    %v246 = vld [vmem:[%s239 + $0x30] sm:$0xff]
    %v247 = vld [vmem:[%s239 + $0x38] sm:$0xff]
    %v248 = vld [vmem:[%s239 + $0x40] sm:$0xff]
    %v249 = vld [vmem:[%s239 + $0x48] sm:$0xff]
    %v250 = vld [vmem:[%s239 + $0x50] sm:$0xff]
    %v251 = vld [vmem:[%s239 + $0x58] sm:$0xff]
    %v252 = vld [vmem:[%s239 + $0x60] sm:$0xff]
    %v253 = vld [vmem:[%s239 + $0x68] sm:$0xff]
    %v254 = vld [vmem:[%s239 + $0x70] sm:$0xff]
    %v255 = vld [vmem:[%s239 + $0x78] sm:$0xff]
    %256 = vmatpush.msra.mxu0 %v255
    %257 = vmatpush.msra.mxu0 %v254
    %258 = vmatpush.msra.mxu0 %v253
    %259 = vmatpush.msra.mxu0 %v252
    %260 = vmatpush.msra.mxu0 %v251
    %261 = vmatpush.msra.mxu0 %v250
    %262 = vmatpush.msra.mxu0 %v249
    %263 = vmatpush.msra.mxu0 %v248
    %264 = vmatpush.msra.mxu0 %v247
    %265 = vmatpush.msra.mxu0 %v246
    %266 = vmatpush.msra.mxu0 %v245
    %267 = vmatpush.msra.mxu0 %v244
    %268 = vmatpush.msra.mxu0 %v243
    %269 = vmatpush.msra.mxu0 %v242
    %270 = vmatpush.msra.mxu0 %v241
    %271 = vmatpush.msra.mxu0 %v240
    %272 = vmatmul.f32.gmra.mxu0 %v237
    %v273 = vpop.f32.mrf.mxu0
    %v274 = vadd.f32 0.0, %v273
    %275 = vmatmul.f32.gmra.mxu0 %v238
    %v276 = vpop.f32.mrf.mxu0
    %v277 = vadd.f32 0.0, %v276
    %278 = vdwg.mxu0
    %v279 = vadd.f32 %v235, %v274
    %v280 = vadd.f32 %v236, %v277
    %v281 = vld [vmem:[#allocation2 + $0x8] sm:$0xff]
    %v282 = vld [vmem:[#allocation2 + $0x18] sm:$0xff]
    %s283 = scalar_lea.vmem [#allocation7], 512
    %v284 = vld [vmem:[%s283] sm:$0xff]
    %v285 = vld [vmem:[%s283 + $0x8] sm:$0xff]
    %v286 = vld [vmem:[%s283 + $0x10] sm:$0xff]
    %v287 = vld [vmem:[%s283 + $0x18] sm:$0xff]
    %v288 = vld [vmem:[%s283 + $0x20] sm:$0xff]
    %v289 = vld [vmem:[%s283 + $0x28] sm:$0xff]
    %v290 = vld [vmem:[%s283 + $0x30] sm:$0xff]
    %v291 = vld [vmem:[%s283 + $0x38] sm:$0xff]
    %v292 = vld [vmem:[%s283 + $0x40] sm:$0xff]
    %v293 = vld [vmem:[%s283 + $0x48] sm:$0xff]
    %v294 = vld [vmem:[%s283 + $0x50] sm:$0xff]
    %v295 = vld [vmem:[%s283 + $0x58] sm:$0xff]
    %v296 = vld [vmem:[%s283 + $0x60] sm:$0xff]
    %v297 = vld [vmem:[%s283 + $0x68] sm:$0xff]
    %v298 = vld [vmem:[%s283 + $0x70] sm:$0xff]
    %v299 = vld [vmem:[%s283 + $0x78] sm:$0xff]
    %300 = vmatpush.msra.mxu0 %v299
    %301 = vmatpush.msra.mxu0 %v298
    %302 = vmatpush.msra.mxu0 %v297
    %303 = vmatpush.msra.mxu0 %v296
    %304 = vmatpush.msra.mxu0 %v295
    %305 = vmatpush.msra.mxu0 %v294
    %306 = vmatpush.msra.mxu0 %v293
    %307 = vmatpush.msra.mxu0 %v292
    %308 = vmatpush.msra.mxu0 %v291
    %309 = vmatpush.msra.mxu0 %v290
    %310 = vmatpush.msra.mxu0 %v289
    %311 = vmatpush.msra.mxu0 %v288
    %312 = vmatpush.msra.mxu0 %v287
    %313 = vmatpush.msra.mxu0 %v286
    %314 = vmatpush.msra.mxu0 %v285
    %315 = vmatpush.msra.mxu0 %v284
    %316 = vmatmul.f32.gmra.mxu0 %v281
    %v317 = vpop.f32.mrf.mxu0
    %v318 = vadd.f32 0.0, %v317
    %319 = vmatmul.f32.gmra.mxu0 %v282
    %v320 = vpop.f32.mrf.mxu0
    %v321 = vadd.f32 0.0, %v320
    %322 = vdwg.mxu0
    %v323 = vadd.f32 %v279, %v318
    %v324 = vadd.f32 %v280, %v321
    %v325 = vmax.f32 %v323, 0.0
    %v326 = vmax.f32 %v324, 0.0
    %327 = vst [vmem:[#allocation3 + $0x8] sm:$0xff] %v325
    %328 = vst [vmem:[#allocation3 + $0x18] sm:$0xff] %v326
    %v329 = vld [vmem:[%s4] sm:$0x1]
    %v331 = vperm.slane %v329, 0
    %v333 = vld [vmem:[#allocation3 + $0x4] sm:$0xff]
    %v334 = vld [vmem:[#allocation3 + $0x14] sm:$0xff]
    %v335 = vld [vmem:[#allocation9] sm:$0xff]
    %v336 = vld [vmem:[#allocation9 + $0x8] sm:$0xff]
    %v337 = vld [vmem:[#allocation9 + $0x10] sm:$0xff]
    %v338 = vld [vmem:[#allocation9 + $0x18] sm:$0xff]
    %v339 = vld [vmem:[#allocation9 + $0x20] sm:$0xff]
    %v340 = vld [vmem:[#allocation9 + $0x28] sm:$0xff]
    %v341 = vld [vmem:[#allocation9 + $0x30] sm:$0xff]
    %v342 = vld [vmem:[#allocation9 + $0x38] sm:$0xff]
    %v343 = vld [vmem:[#allocation9 + $0x40] sm:$0xff]
    %v344 = vld [vmem:[#allocation9 + $0x48] sm:$0xff]
    %v345 = vld [vmem:[#allocation9 + $0x50] sm:$0xff]
    %v346 = vld [vmem:[#allocation9 + $0x58] sm:$0xff]
    %v347 = vld [vmem:[#allocation9 + $0x60] sm:$0xff]
    %v348 = vld [vmem:[#allocation9 + $0x68] sm:$0xff]
    %v349 = vld [vmem:[#allocation9 + $0x70] sm:$0xff]
    %v350 = vld [vmem:[#allocation9 + $0x78] sm:$0xff]
    %351 = vmatpush.msra.mxu0 %v350
    %352 = vmatpush.msra.mxu0 %v349
    %353 = vmatpush.msra.mxu0 %v348
    %354 = vmatpush.msra.mxu0 %v347
    %355 = vmatpush.msra.mxu0 %v346
    %356 = vmatpush.msra.mxu0 %v345
    %357 = vmatpush.msra.mxu0 %v344
    %358 = vmatpush.msra.mxu0 %v343
    %359 = vmatpush.msra.mxu0 %v342
    %360 = vmatpush.msra.mxu0 %v341
    %361 = vmatpush.msra.mxu0 %v340
    %362 = vmatpush.msra.mxu0 %v339
    %363 = vmatpush.msra.mxu0 %v338
    %364 = vmatpush.msra.mxu0 %v337
    %365 = vmatpush.msra.mxu0 %v336
    %366 = vmatpush.msra.mxu0 %v335
    %367 = vmatmul.f32.gmra.mxu0 %v333
    %v368 = vpop.f32.mrf.mxu0
    %v369 = vadd.f32 0.0, %v368
    %370 = vmatmul.f32.gmra.mxu0 %v334
    %v371 = vpop.f32.mrf.mxu0
    %v372 = vadd.f32 0.0, %v371
    %373 = vdwg.mxu0
    %v374 = vadd.f32 %v331, %v369
    %v375 = vadd.f32 %v331, %v372
    %v376 = vld [vmem:[#allocation3 + $0x5] sm:$0xff]
    %v377 = vld [vmem:[#allocation3 + $0x15] sm:$0xff]
    %s378 = scalar_lea.vmem [#allocation9], 128
    %v379 = vld [vmem:[%s378] sm:$0xff]
    %v380 = vld [vmem:[%s378 + $0x8] sm:$0xff]
    %v381 = vld [vmem:[%s378 + $0x10] sm:$0xff]
    %v382 = vld [vmem:[%s378 + $0x18] sm:$0xff]
    %v383 = vld [vmem:[%s378 + $0x20] sm:$0xff]
    %v384 = vld [vmem:[%s378 + $0x28] sm:$0xff]
    %v385 = vld [vmem:[%s378 + $0x30] sm:$0xff]
    %v386 = vld [vmem:[%s378 + $0x38] sm:$0xff]
    %v387 = vld [vmem:[%s378 + $0x40] sm:$0xff]
    %v388 = vld [vmem:[%s378 + $0x48] sm:$0xff]
    %v389 = vld [vmem:[%s378 + $0x50] sm:$0xff]
    %v390 = vld [vmem:[%s378 + $0x58] sm:$0xff]
    %v391 = vld [vmem:[%s378 + $0x60] sm:$0xff]
    %v392 = vld [vmem:[%s378 + $0x68] sm:$0xff]
    %v393 = vld [vmem:[%s378 + $0x70] sm:$0xff]
    %v394 = vld [vmem:[%s378 + $0x78] sm:$0xff]
    %395 = vmatpush.msra.mxu0 %v394
    %396 = vmatpush.msra.mxu0 %v393
    %397 = vmatpush.msra.mxu0 %v392
    %398 = vmatpush.msra.mxu0 %v391
    %399 = vmatpush.msra.mxu0 %v390
    %400 = vmatpush.msra.mxu0 %v389
    %401 = vmatpush.msra.mxu0 %v388
    %402 = vmatpush.msra.mxu0 %v387
    %403 = vmatpush.msra.mxu0 %v386
    %404 = vmatpush.msra.mxu0 %v385
    %405 = vmatpush.msra.mxu0 %v384
    %406 = vmatpush.msra.mxu0 %v383
    %407 = vmatpush.msra.mxu0 %v382
    %408 = vmatpush.msra.mxu0 %v381
    %409 = vmatpush.msra.mxu0 %v380
    %410 = vmatpush.msra.mxu0 %v379
    %411 = vmatmul.f32.gmra.mxu0 %v376
    %v412 = vpop.f32.mrf.mxu0
    %v413 = vadd.f32 0.0, %v412
    %414 = vmatmul.f32.gmra.mxu0 %v377
    %v415 = vpop.f32.mrf.mxu0
    %v416 = vadd.f32 0.0, %v415
    %417 = vdwg.mxu0
    %v418 = vadd.f32 %v374, %v413
    %v419 = vadd.f32 %v375, %v416
    %v420 = vld [vmem:[#allocation3 + $0x6] sm:$0xff]
    %v421 = vld [vmem:[#allocation3 + $0x16] sm:$0xff]
    %s422 = scalar_lea.vmem [#allocation9], 256
    %v423 = vld [vmem:[%s422] sm:$0xff]
    %v424 = vld [vmem:[%s422 + $0x8] sm:$0xff]
    %v425 = vld [vmem:[%s422 + $0x10] sm:$0xff]
    %v426 = vld [vmem:[%s422 + $0x18] sm:$0xff]
    %v427 = vld [vmem:[%s422 + $0x20] sm:$0xff]
    %v428 = vld [vmem:[%s422 + $0x28] sm:$0xff]
    %v429 = vld [vmem:[%s422 + $0x30] sm:$0xff]
    %v430 = vld [vmem:[%s422 + $0x38] sm:$0xff]
    %v431 = vld [vmem:[%s422 + $0x40] sm:$0xff]
    %v432 = vld [vmem:[%s422 + $0x48] sm:$0xff]
    %v433 = vld [vmem:[%s422 + $0x50] sm:$0xff]
    %v434 = vld [vmem:[%s422 + $0x58] sm:$0xff]
    %v435 = vld [vmem:[%s422 + $0x60] sm:$0xff]
    %v436 = vld [vmem:[%s422 + $0x68] sm:$0xff]
    %v437 = vld [vmem:[%s422 + $0x70] sm:$0xff]
    %v438 = vld [vmem:[%s422 + $0x78] sm:$0xff]
    %439 = vmatpush.msra.mxu0 %v438
    %440 = vmatpush.msra.mxu0 %v437
    %441 = vmatpush.msra.mxu0 %v436
    %442 = vmatpush.msra.mxu0 %v435
    %443 = vmatpush.msra.mxu0 %v434
    %444 = vmatpush.msra.mxu0 %v433
    %445 = vmatpush.msra.mxu0 %v432
    %446 = vmatpush.msra.mxu0 %v431
    %447 = vmatpush.msra.mxu0 %v430
    %448 = vmatpush.msra.mxu0 %v429
    %449 = vmatpush.msra.mxu0 %v428
    %450 = vmatpush.msra.mxu0 %v427
    %451 = vmatpush.msra.mxu0 %v426
    %452 = vmatpush.msra.mxu0 %v425
    %453 = vmatpush.msra.mxu0 %v424
    %454 = vmatpush.msra.mxu0 %v423
    %455 = vmatmul.f32.gmra.mxu0 %v420
    %v456 = vpop.f32.mrf.mxu0
    %v457 = vadd.f32 0.0, %v456
    %458 = vmatmul.f32.gmra.mxu0 %v421
    %v459 = vpop.f32.mrf.mxu0
    %v460 = vadd.f32 0.0, %v459
    %461 = vdwg.mxu0
    %v462 = vadd.f32 %v418, %v457
    %v463 = vadd.f32 %v419, %v460
    %v464 = vld [vmem:[#allocation3 + $0x7] sm:$0xff]
    %v465 = vld [vmem:[#allocation3 + $0x17] sm:$0xff]
    %s466 = scalar_lea.vmem [#allocation9], 384
    %v467 = vld [vmem:[%s466] sm:$0xff]
    %v468 = vld [vmem:[%s466 + $0x8] sm:$0xff]
    %v469 = vld [vmem:[%s466 + $0x10] sm:$0xff]
    %v470 = vld [vmem:[%s466 + $0x18] sm:$0xff]
    %v471 = vld [vmem:[%s466 + $0x20] sm:$0xff]
    %v472 = vld [vmem:[%s466 + $0x28] sm:$0xff]
    %v473 = vld [vmem:[%s466 + $0x30] sm:$0xff]
    %v474 = vld [vmem:[%s466 + $0x38] sm:$0xff]
    %v475 = vld [vmem:[%s466 + $0x40] sm:$0xff]
    %v476 = vld [vmem:[%s466 + $0x48] sm:$0xff]
    %v477 = vld [vmem:[%s466 + $0x50] sm:$0xff]
    %v478 = vld [vmem:[%s466 + $0x58] sm:$0xff]
    %v479 = vld [vmem:[%s466 + $0x60] sm:$0xff]
    %v480 = vld [vmem:[%s466 + $0x68] sm:$0xff]
    %v481 = vld [vmem:[%s466 + $0x70] sm:$0xff]
    %v482 = vld [vmem:[%s466 + $0x78] sm:$0xff]
    %483 = vmatpush.msra.mxu0 %v482
    %484 = vmatpush.msra.mxu0 %v481
    %485 = vmatpush.msra.mxu0 %v480
    %486 = vmatpush.msra.mxu0 %v479
    %487 = vmatpush.msra.mxu0 %v478
    %488 = vmatpush.msra.mxu0 %v477
    %489 = vmatpush.msra.mxu0 %v476
    %490 = vmatpush.msra.mxu0 %v475
    %491 = vmatpush.msra.mxu0 %v474
    %492 = vmatpush.msra.mxu0 %v473
    %493 = vmatpush.msra.mxu0 %v472
    %494 = vmatpush.msra.mxu0 %v471
    %495 = vmatpush.msra.mxu0 %v470
    %496 = vmatpush.msra.mxu0 %v469
    %497 = vmatpush.msra.mxu0 %v468
    %498 = vmatpush.msra.mxu0 %v467
    %499 = vmatmul.f32.gmra.mxu0 %v464
    %v500 = vpop.f32.mrf.mxu0
    %v501 = vadd.f32 0.0, %v500
    %502 = vmatmul.f32.gmra.mxu0 %v465
    %v503 = vpop.f32.mrf.mxu0
    %v504 = vadd.f32 0.0, %v503
    %505 = vdwg.mxu0
    %v506 = vadd.f32 %v462, %v501
    %v507 = vadd.f32 %v463, %v504
    %v508 = vld [vmem:[#allocation3 + $0x8] sm:$0xff]
    %v509 = vld [vmem:[#allocation3 + $0x18] sm:$0xff]
    %s510 = scalar_lea.vmem [#allocation9], 512
    %v511 = vld [vmem:[%s510] sm:$0xff]
    %v512 = vld [vmem:[%s510 + $0x8] sm:$0xff]
    %v513 = vld [vmem:[%s510 + $0x10] sm:$0xff]
    %v514 = vld [vmem:[%s510 + $0x18] sm:$0xff]
    %v515 = vld [vmem:[%s510 + $0x20] sm:$0xff]
    %v516 = vld [vmem:[%s510 + $0x28] sm:$0xff]
    %v517 = vld [vmem:[%s510 + $0x30] sm:$0xff]
    %v518 = vld [vmem:[%s510 + $0x38] sm:$0xff]
    %v519 = vld [vmem:[%s510 + $0x40] sm:$0xff]
    %v520 = vld [vmem:[%s510 + $0x48] sm:$0xff]
    %v521 = vld [vmem:[%s510 + $0x50] sm:$0xff]
    %v522 = vld [vmem:[%s510 + $0x58] sm:$0xff]
    %v523 = vld [vmem:[%s510 + $0x60] sm:$0xff]
    %v524 = vld [vmem:[%s510 + $0x68] sm:$0xff]
    %v525 = vld [vmem:[%s510 + $0x70] sm:$0xff]
    %v526 = vld [vmem:[%s510 + $0x78] sm:$0xff]
    %527 = vmatpush.msra.mxu0 %v526
    %528 = vmatpush.msra.mxu0 %v525
    %529 = vmatpush.msra.mxu0 %v524
    %530 = vmatpush.msra.mxu0 %v523
    %531 = vmatpush.msra.mxu0 %v522
    %532 = vmatpush.msra.mxu0 %v521
    %533 = vmatpush.msra.mxu0 %v520
    %534 = vmatpush.msra.mxu0 %v519
    %535 = vmatpush.msra.mxu0 %v518
    %536 = vmatpush.msra.mxu0 %v517
    %537 = vmatpush.msra.mxu0 %v516
    %538 = vmatpush.msra.mxu0 %v515
    %539 = vmatpush.msra.mxu0 %v514
    %540 = vmatpush.msra.mxu0 %v513
    %541 = vmatpush.msra.mxu0 %v512
    %542 = vmatpush.msra.mxu0 %v511
    %543 = vmatmul.f32.gmra.mxu0 %v508
    %v544 = vpop.f32.mrf.mxu0
    %v545 = vadd.f32 0.0, %v544
    %546 = vmatmul.f32.gmra.mxu0 %v509
    %v547 = vpop.f32.mrf.mxu0
    %v548 = vadd.f32 0.0, %v547
    %549 = vdwg.mxu0
    %v550 = vadd.f32 %v506, %v545
    %v551 = vadd.f32 %v507, %v548
    %v552 = vmax.f32 %v550, 0.0
    %v553 = vmax.f32 %v551, 0.0
    %v554 = vld [vmem:[#allocation10] sm:$0xff]
    %v555 = vld [vmem:[#allocation10 + $0x8] sm:$0xff]
    %v556 = vld [vmem:[#allocation10 + $0x10] sm:$0xff]
    %v557 = vld [vmem:[#allocation10 + $0x18] sm:$0xff]
    %v558 = vld [vmem:[#allocation10 + $0x20] sm:$0xff]
    %v559 = vld [vmem:[#allocation10 + $0x28] sm:$0xff]
    %v560 = vld [vmem:[#allocation10 + $0x30] sm:$0xff]
    %v561 = vld [vmem:[#allocation10 + $0x38] sm:$0xff]
    %v562 = vld [vmem:[#allocation10 + $0x40] sm:$0xff]
    %v563 = vld [vmem:[#allocation10 + $0x48] sm:$0xff]
    %v564 = vld [vmem:[#allocation10 + $0x50] sm:$0xff]
    %v565 = vld [vmem:[#allocation10 + $0x58] sm:$0xff]
    %v566 = vld [vmem:[#allocation10 + $0x60] sm:$0xff]
    %v567 = vld [vmem:[#allocation10 + $0x68] sm:$0xff]
    %v568 = vld [vmem:[#allocation10 + $0x70] sm:$0xff]
    %v569 = vld [vmem:[#allocation10 + $0x78] sm:$0xff]
    %v570 = vld [vmem:[%s6] sm:$0x1]
    %v572 = vperm.slane %v570, 0
    %574 = vmatpush.msra.mxu0 %v569
    %575 = vmatpush.msra.mxu0 %v568
    %576 = vmatpush.msra.mxu0 %v567
    %577 = vmatpush.msra.mxu0 %v566
    %578 = vmatpush.msra.mxu0 %v565
    %579 = vmatpush.msra.mxu0 %v564
    %580 = vmatpush.msra.mxu0 %v563
    %581 = vmatpush.msra.mxu0 %v562
    %582 = vmatpush.msra.mxu0 %v561
    %583 = vmatpush.msra.mxu0 %v560
    %584 = vmatpush.msra.mxu0 %v559
    %585 = vmatpush.msra.mxu0 %v558
    %586 = vmatpush.msra.mxu0 %v557
    %587 = vmatpush.msra.mxu0 %v556
    %588 = vmatpush.msra.mxu0 %v555
    %589 = vmatpush.msra.mxu0 %v554
    %590 = vmatmul.f32.gmra.mxu0 %v90
    %v591 = vpop.f32.mrf.mxu0
    %v592 = vadd.f32 %v572, %v591
    %593 = vmatmul.f32.gmra.mxu0 %v91
    %v594 = vpop.f32.mrf.mxu0
    %v595 = vadd.f32 %v572, %v594
    %596 = vdwg.mxu0
    %v597 = vadd.f32 %v552, %v592
    %v598 = vadd.f32 %v553, %v595
    %v599 = vmax.f32 %v597, 0.0
    %v600 = vmax.f32 %v598, 0.0
    %601 = vst [vmem:[#allocation12] sm:$0xff] %v599
    %602 = vst [vmem:[#allocation12 + $0x8] sm:$0xff] %v600
    // Predicated region
    $region50: #{tpu_custom_call.1} parent=1 // pred_check
      _
    $region51: #{tpu_custom_call.1} parent=1 // pred_check_branch
      %604 = sbr.rel (0) target = $region53
    $region52: #{tpu_custom_call.1} parent=1 // pred_region
      %606 = vsyncadd [#allocation6], 0
      %s607 = sshll.u32 [#allocation12], 4
      %s608 = int_to_ptr.vmem [resolvable:$true] %s607
      %s609 = sshll.u32 %s7, 4
      %s610 = int_to_ptr.hbm [resolvable:$true] %s609
      %615 = dma.vmem_to_hbm [thread:$0]  %s608, 256, %s610, [#allocation6], 128, 128, 8
    $region53: #{tpu_custom_call.1} parent=1 // pred_fallthru
      _
    // Predicated region
    $region54: #{tpu_custom_call.1} parent=1 // pred_check
      _
    $region55: #{tpu_custom_call.1} parent=1 // pred_check_branch
      %617 = sbr.rel (0) target = $region57
    $region56: #{tpu_custom_call.1} parent=1 // pred_region
      %619 = dma.done [#allocation6], 256
    $region57: #{tpu_custom_call.1} parent=1 // pred_fallthru
      _
    %620 = vsyncpa [#allocation5], 1
    %621 = vsyncpa [#allocation8], 1
    %622 = vsyncpa [#allocation11], 1
    %623 = vsyncpa [#allocation6], 1

</llo_original>
